<compile_context>
chip_gen: v5e
topology: v5e:2x2
jax: 0.10.0
libtpu: 0.0.40
codegen_flags: <defaults>
</compile_context>

<pallas_src>
import functools

import jax
import jax.numpy as jnp
from jax import lax
from jax.experimental import pallas as pl
from jax.experimental.pallas import tpu as pltpu


def _round_up(n, m):
    return ((n + m - 1) // m) * m


def _myconv_kernel(x_ref, w0_ref, w1_ref, b_ref, o_ref, carry_ref, *,
                   dilation, block_t):
    """Process one (block_t, C_in) slab of the flattened row stream.

    carry_ref holds the previous row tile of the same group, so the dilated
    (row - d) tap never has to be re-read (or pre-shifted) from HBM.
    """
    t = pl.program_id(1)

    # First tile of each group: nothing precedes it (rows 0..d-1 of a group are
    # the leading causal-zero rows of its first batch anyway).
    @pl.when(t == 0)
    def _():
        carry_ref[...] = jnp.zeros_like(carry_ref)

    x_cur = x_ref[...]                                   # (block_t, C_in)

    # Build x[row - d]: rows [0, d) come from the tail of the previous tile
    # (the carry), rows [d, block_t) are the current tile shifted down by d.
    # select-then-roll: sel[r] = carry[r] for r >= block_t - d else x_cur[r];
    # rolling by +d along sublanes places every row where it belongs.
    row = lax.broadcasted_iota(jnp.int32, x_cur.shape, 0)
    sel = jnp.where(row >= block_t - dilation, carry_ref[...], x_cur)
    x_prev = pltpu.roll(sel, dilation, axis=0)

    acc = jnp.dot(x_prev, w0_ref[...], preferred_element_type=jnp.float32)
    acc = acc + jnp.dot(x_cur, w1_ref[...], preferred_element_type=jnp.float32)
    acc = acc + b_ref[...]                               # (1, C_out) f32 broadcast
    o_ref[...] = jnp.tanh(acc).astype(o_ref.dtype)

    # Save this tile for the next row tile of the same group.
    carry_ref[...] = x_cur


def _choose_tiling(T, dilation, mult, group_b, target_rows):
    """Pick per-batch padded length S and row-tile bt such that
    bt divides group_b * S, bt is a multiple of `mult`, and bt >= dilation.
    Minimizes step count, tie-breaking on the smaller pad."""
    S0 = _round_up(T + dilation, mult)
    d_units = -(-dilation // mult)                       # ceil(d / mult)
    kmax_pref = max(target_rows // mult, d_units, 1)
    best = None                                          # (steps, S, bt)
    for extra in range(8):
        S = S0 + extra * mult
        units = (group_b * S) // mult
        bt = None
        for k in range(min(kmax_pref, units), 0, -1):
            if units % k == 0 and k >= d_units:
                bt = k * mult
                break
        if bt is None:                                   # fallback: one tile per group
            bt = units * mult
        steps = (group_b * S) // bt
        cand = (steps, S, bt)
        if best is None or cand[:2] < best[:2]:
            best = cand
    return best[1], best[2]


def myconv_forward(x, weight, bias, dilation=1, *, block_t=1024,
                   compute_dtype=None):
    """x: (B, T, C_in); weight: (C_out, C_in, 2); bias: (C_out,) -> (B, T, C_out)."""
    B, T, Cin = x.shape
    Cout = weight.shape[0]
    dtype = jnp.dtype(compute_dtype) if compute_dtype is not None else jnp.dtype(x.dtype)

    # Sublane granularity: 8 rows for 4-byte dtypes, 16 for 2-byte dtypes.
    mult = max(8, 32 // dtype.itemsize)
    groups = 2 if (B % 2 == 0 and B >= 2) else 1         # megacore split on batch halves
    gb = B // groups

    S, bt = _choose_tiling(T, dilation, mult, gb, max(int(block_t), mult))
    R = gb * S
    nt = R // bt

    # Per-batch layout [zeros(d) | x_b | zeros(tail)], flattened group-major:
    # the causal tap x[t-d] is then always "d rows above" in the row stream.
    xz = jnp.pad(x.astype(dtype), ((0, 0), (dilation, S - dilation - T), (0, 0)))
    xz = xz.reshape(groups, R, Cin)

    w0 = weight[:, :, 0].T.astype(dtype)                 # (C_in, C_out), tap on x[t-d]
    w1 = weight[:, :, 1].T.astype(dtype)                 # (C_in, C_out), tap on x[t]
    b2 = bias.reshape(1, Cout).astype(jnp.float32)

    kernel = functools.partial(_myconv_kernel, dilation=dilation, block_t=bt)

    out = pl.pallas_call(
        kernel,
        out_shape=jax.ShapeDtypeStruct((groups, R, Cout), dtype),
        grid=(groups, nt),
        in_specs=[
            pl.BlockSpec((None, bt, Cin), lambda g, t: (g, t, 0)),   # activations
            pl.BlockSpec((Cin, Cout), lambda g, t: (0, 0)),          # W0 (resident)
            pl.BlockSpec((Cin, Cout), lambda g, t: (0, 0)),          # W1 (resident)
            pl.BlockSpec((1, Cout), lambda g, t: (0, 0)),            # bias (resident)
        ],
        out_specs=pl.BlockSpec((None, bt, Cout), lambda g, t: (g, t, 0)),
        scratch_shapes=[pltpu.VMEM((bt, Cin), dtype)],               # row-tile carry
        compiler_params=pltpu.CompilerParams(
            dimension_semantics=("parallel", "arbitrary"),
            vmem_limit_bytes=32 * 1024 * 1024,
        ),
    )(xz, w0, w1, b2)

    out = out.reshape(B, S, Cout)[:, dilation:dilation + T, :]
    return out


def _reference(x, weight, bias, dilation):
    """Plain-JAX reference mirroring the PyTorch module exactly (f32)."""
    B, T, Cin = x.shape
    xprev = jnp.concatenate(
        [jnp.zeros((B, dilation, Cin), x.dtype), x], axis=1)[:, :T, :]
    y = (jnp.einsum("btc,oc->bto", xprev, weight[:, :, 0])
         + jnp.einsum("btc,oc->bto", x, weight[:, :, 1])
         + bias[None, None, :])
    return jnp.tanh(y)


# TODO(synk): softquant=True path (soft_quant / weight_norm wrapper) is a training-time
# weight transform with no separate forward op; only the plain-conv inference path is
# implemented here.

if __name__ == "__main__":
    def make_inputs(key, B, T, Cin, Cout):
        kx, kw, kb = jax.random.split(key, 3)
        x = jax.random.normal(kx, (B, T, Cin), dtype=jnp.float32)
        fan_in = Cin * 2                       # Conv1d(kernel_size=2) fan-in
        bound = 1.0 / (fan_in ** 0.5)
        w = jax.random.uniform(kw, (Cout, Cin, 2), jnp.float32, -bound, bound)
        b = jax.random.uniform(kb, (Cout,), jnp.float32, -bound, bound)
        return x, w, b

    key_a, key_b = jax.random.split(jax.random.PRNGKey(0))

    # Config A: tiny spec-like shapes, f32, dilation=1, two megacore groups.
    xA, wA, bA = make_inputs(key_a, 2, 8, 32, 32)
    outA = jax.block_until_ready(myconv_forward(xA, wA, bA, dilation=1))
    refA = _reference(xA, wA, bA, 1)
    assert outA.shape == refA.shape
    assert jnp.allclose(outA, refA, atol=1e-5, rtol=1e-5), "f32 mismatch vs reference"

    # Config B: odd batch, ragged sequence, bf16 storage/compute, dilation=2,
    # several row tiles (exercises the carry, batch fusion inside a tile, padding).
    xB, wB, bB = make_inputs(key_b, 3, 40, 24, 32)
    outB = jax.block_until_ready(
        myconv_forward(xB, wB, bB, dilation=2, block_t=32,
                       compute_dtype=jnp.bfloat16))
    refB = _reference(xB, wB, bB, 2)
    assert outB.shape == refB.shape
    assert jnp.allclose(outB.astype(jnp.float32), refB, atol=5e-2, rtol=5e-2), \
        "bf16 mismatch vs reference"

    print("KERNEL_OK")
</pallas_src>

<mosaic_0001>
module attributes {stable_mosaic.version = 11 : i64} {
  func.func @_myconv_kernel(%arg0: i32, %arg1: i32, %arg2: memref<1x16x32xf32, #tpu.memory_space<vmem>>, %arg3: memref<32x32xf32, #tpu.memory_space<vmem>>, %arg4: memref<32x32xf32, #tpu.memory_space<vmem>>, %arg5: memref<1x32xf32, #tpu.memory_space<vmem>>, %arg6: memref<1x16x32xf32, #tpu.memory_space<vmem>>, %arg7: memref<16x32xf32, #tpu.memory_space<vmem>>) attributes {dimension_semantics = [#tpu.dimension_semantics<parallel>, #tpu.dimension_semantics<arbitrary>], iteration_bounds = array<i64: 2, 1>, scalar_prefetch = 0 : i64, scratch_operands = 1 : i64, tpu.core_type = #tpu.core_type<tc>, window_params = [{transform_indices = @transform_0, window_bounds = array<i64: 1, 16, 32>}, {pipeline_mode = #tpu.pipeline_mode<synchronous>, transform_indices = @transform_1, window_bounds = array<i64: 32, 32>}, {pipeline_mode = #tpu.pipeline_mode<synchronous>, transform_indices = @transform_2, window_bounds = array<i64: 32, 32>}, {pipeline_mode = #tpu.pipeline_mode<synchronous>, transform_indices = @transform_3, window_bounds = array<i64: 1, 32>}, {transform_indices = @transform_4, window_bounds = array<i64: 1, 16, 32>}]} {
    %c0_i32 = arith.constant 0 : i32
    %0 = arith.cmpi eq, %arg1, %c0_i32 : i32
    %1 = arith.extui %0 : i1 to i32
    %c0_i32_0 = arith.constant 0 : i32
    %2 = arith.cmpi ne, %1, %c0_i32_0 : i32
    scf.if %2 {
      %cst_17 = arith.constant 0.000000e+00 : f32
      %24 = vector.broadcast %cst_17 : f32 to vector<16x32xf32>
      %c0_18 = arith.constant 0 : index
      %c0_19 = arith.constant 0 : index
      %25 = vector.load %arg7[%c0_18, %c0_19] : memref<16x32xf32, #tpu.memory_space<vmem>>, vector<16x32xf32>
      tpu.vector_store %arg7[%c0_18, %c0_19], %24 {strides = array<i32>} : memref<16x32xf32, #tpu.memory_space<vmem>>, vector<16x32xf32>,
    } else {
    }
    %c0 = arith.constant 0 : index
    %c0_1 = arith.constant 0 : index
    %c0_2 = arith.constant 0 : index
    %3 = vector.load %arg2[%c0, %c0_1, %c0_2] : memref<1x16x32xf32, #tpu.memory_space<vmem>>, vector<1x16x32xf32>
    %4 = vector.shape_cast %3 : vector<1x16x32xf32> to vector<16x32xf32>
    %5 = tpu.iota {dimensions = array<i32: 0>} : vector<16x32xi32>
    %c15_i32 = arith.constant 15 : i32
    %6 = vector.broadcast %c15_i32 : i32 to vector<16x32xi32>
    %7 = arith.cmpi sge, %5, %6 : vector<16x32xi32>
    %c0_3 = arith.constant 0 : index
    %c0_4 = arith.constant 0 : index
    %8 = vector.load %arg7[%c0_3, %c0_4] : memref<16x32xf32, #tpu.memory_space<vmem>>, vector<16x32xf32>
    %9 = arith.select %7, %8, %4 : vector<16x32xi1>, vector<16x32xf32>
    %c1_i32 = arith.constant 1 : i32
    %10 = tpu.dynamic_rotate %9 by %c1_i32 dim 0 : vector<16x32xf32>, i32 -> vector<16x32xf32>
    %c0_5 = arith.constant 0 : index
    %c0_6 = arith.constant 0 : index
    %11 = vector.load %arg3[%c0_5, %c0_6] : memref<32x32xf32, #tpu.memory_space<vmem>>, vector<32x32xf32>
    %cst = arith.constant dense<0.000000e+00> : vector<16x32xf32>
    %12 = tpu.matmul %10, %11, %cst {dimension_numbers = #tpu.dot_dimension_numbers<[1], [0], [0], [1], [0, 0, 1, 1], [], []>} : vector<16x32xf32>, vector<32x32xf32>, vector<16x32xf32> -> vector<16x32xf32>
    %c0_7 = arith.constant 0 : index
    %c0_8 = arith.constant 0 : index
    %13 = vector.load %arg4[%c0_7, %c0_8] : memref<32x32xf32, #tpu.memory_space<vmem>>, vector<32x32xf32>
    %cst_9 = arith.constant dense<0.000000e+00> : vector<16x32xf32>
    %14 = tpu.matmul %4, %13, %cst_9 {dimension_numbers = #tpu.dot_dimension_numbers<[1], [0], [0], [1], [0, 0, 1, 1], [], []>} : vector<16x32xf32>, vector<32x32xf32>, vector<16x32xf32> -> vector<16x32xf32>
    %15 = arith.addf %12, %14 : vector<16x32xf32>
    %c0_10 = arith.constant 0 : index
    %c0_11 = arith.constant 0 : index
    %16 = vector.load %arg5[%c0_10, %c0_11] : memref<1x32xf32, #tpu.memory_space<vmem>>, vector<1x32xf32>
    %17 = vector.broadcast %16 : vector<1x32xf32> to vector<16x32xf32>
    %18 = arith.addf %15, %17 : vector<16x32xf32>
    %19 = math.tanh %18 : vector<16x32xf32>
    %c0_12 = arith.constant 0 : index
    %c0_13 = arith.constant 0 : index
    %c0_14 = arith.constant 0 : index
    %20 = vector.load %arg6[%c0_12, %c0_13, %c0_14] : memref<1x16x32xf32, #tpu.memory_space<vmem>>, vector<1x16x32xf32>
    %21 = vector.shape_cast %20 : vector<1x16x32xf32> to vector<16x32xf32>
    %22 = vector.shape_cast %19 : vector<16x32xf32> to vector<1x16x32xf32>
    tpu.vector_store %arg6[%c0_12, %c0_13, %c0_14], %22 {strides = array<i32>} : memref<1x16x32xf32, #tpu.memory_space<vmem>>, vector<1x16x32xf32>,
    %c0_15 = arith.constant 0 : index
    %c0_16 = arith.constant 0 : index
    %23 = vector.load %arg7[%c0_15, %c0_16] : memref<16x32xf32, #tpu.memory_space<vmem>>, vector<16x32xf32>
    tpu.vector_store %arg7[%c0_15, %c0_16], %4 {strides = array<i32>} : memref<16x32xf32, #tpu.memory_space<vmem>>, vector<16x32xf32>,
    return
  }
  func.func @transform_0(%arg0: i32, %arg1: i32) -> (i32, i32, i32) {
    %c0_i32 = arith.constant 0 : i32
    %c0_i32_0 = arith.constant 0 : i32
    return %arg0, %arg1, %c0_i32 : i32, i32, i32
  }
  func.func @transform_1(%arg0: i32, %arg1: i32) -> (i32, i32) {
    %c0_i32 = arith.constant 0 : i32
    %c0_i32_0 = arith.constant 0 : i32
    %c0_i32_1 = arith.constant 0 : i32
    return %c0_i32, %c0_i32_0 : i32, i32
  }
  func.func @transform_2(%arg0: i32, %arg1: i32) -> (i32, i32) {
    %c0_i32 = arith.constant 0 : i32
    %c0_i32_0 = arith.constant 0 : i32
    %c0_i32_1 = arith.constant 0 : i32
    return %c0_i32, %c0_i32_0 : i32, i32
  }
  func.func @transform_3(%arg0: i32, %arg1: i32) -> (i32, i32) {
    %c0_i32 = arith.constant 0 : i32
    %c0_i32_0 = arith.constant 0 : i32
    %c0_i32_1 = arith.constant 0 : i32
    return %c0_i32, %c0_i32_0 : i32, i32
  }
  func.func @transform_4(%arg0: i32, %arg1: i32) -> (i32, i32, i32) {
    %c0_i32 = arith.constant 0 : i32
    %c0_i32_0 = arith.constant 0 : i32
    return %arg0, %arg1, %c0_i32 : i32, i32, i32
  }
}

</mosaic_0001>

<llo_original>
// kernel: tpu_custom_call.1
$region0: #{tpu_custom_call.1}
  #allocation0 [shape = 'u32[]', space=smem, size = 0x4, offset = 0x4, fixed_abs, tag = 'smem constant byte address 0x4 - core index']
  #allocation1 [shape = 'u32[72,128]{1,0:T(1,128)}', space=vmem, size = 0x9000, scoped, tag = 'internal scratch']
  #allocation2 [shape = 'f32[16,32]{1,0:T(8,128)}', space=vmem, size = 0x2000, scoped, tag = 'scratch operand']
  %s0 = inlined_call_operand.hbm [shape: f32[2,16,32], index: 0, kind: input, shape index: {}]
  %s1 = inlined_call_operand.hbm [shape: f32[32,32], index: 1, kind: input, shape index: {}]
  %s2 = inlined_call_operand.hbm [shape: f32[32,32], index: 2, kind: input, shape index: {}]
  %s3 = inlined_call_operand.vmem [shape: f32[1,32], index: 3, kind: input, shape index: {}]
  %s4 = inlined_call_operand.hbm [shape: f32[2,16,32], index: 4, kind: output, shape index: {}]
  %s5 = sld [smem:[#allocation0]]
  $region65: #{tpu_custom_call.1} parent=0
    _
  %s7 = ssub.s32 1, %s5
  %s8 = scalar_select 0, %s7, %s5
  $region1: #{tpu_custom_call.1} parent=0
    #allocation3 [shape = 'u8[16384]{0}', space=vmem, size = 0x4000, scoped, tag = 'input window, operand 0']
    #allocation4 [shape = 's32[2]{0}', space=sflag, size = 0x8, scoped, tag = 'scoped memory for tpu_custom_call.1']
    #allocation5 [shape = 's32[2]{0}', space=sflag, size = 0x8, scoped, tag = 'scoped memory for tpu_custom_call.1']
    #allocation6 [shape = 'u8[16384]{0}', space=vmem, size = 0x4000, scoped, tag = 'input window, operand 1, single buffered']
    #allocation7 [shape = 's32[1]{0}', space=sflag, size = 0x4, scoped, tag = 'scoped memory for tpu_custom_call.1']
    #allocation8 [shape = 'u8[16384]{0}', space=vmem, size = 0x4000, scoped, tag = 'input window, operand 2, single buffered']
    #allocation9 [shape = 'u8[16384]{0}', space=vmem, size = 0x4000, scoped, tag = 'output window, operand 0']
    %9 = vsyncpa [#allocation4], 0
    %s10 = scalar_lea.sflag [#allocation4], 1
    %11 = vsyncpa %s10, 0
    %12 = vsyncpa [#allocation7], 0
    %13 = vsyncpa [#allocation5], 0
    %s14 = scalar_lea.sflag [#allocation5], 1
    %15 = vsyncpa %s14, 0
    loop: start=0, step=1, limit=4
    $region2: #{tpu_custom_call.1} parent=1 // loop_pre_header
      _
    $region3: #{tpu_custom_call.1} parent=1 // loop_header
      %s17 = sphi 0, %s21
      %p18 = scmp.ge.s32.totalorder %s17, 4
      %s24 = sphi 0, %s36
      %s25 = sphi 0, %s32
      %s26 = sphi 0, %s24
      %s27 = sphi 0, %s25
      %s28 = sphi 0, %s26
      %s29 = sphi 0, %s27
      %s41 = sphi 0, %s43
      %s44 = sphi 0, %s41
      %s45 = sphi 0, %s44
      %s61 = sphi 0, %s45
      %s65 = sphi 0, %s65
      %s67 = sphi 0, %s65
      %s68 = sphi 0, %s67
      %s82 = sphi 0, %s68
      %s86 = sphi 0, %s86
      %s88 = sphi 0, %s86
      %s89 = sphi 0, %s88
      %s103 = sphi 0, %s89
      %s107 = sphi 0, %s107
      %s109 = sphi 0, %s107
      %s110 = sphi 0, %s109
      %s124 = sphi 0, %s110
      %s132 = sphi 0, %s134
      %s135 = sphi 0, %s132
      %s136 = sphi 0, %s135
      %s152 = sphi 0, %s136
    $region4: #{tpu_custom_call.1} parent=1 // loop_header_branch
      %20 = sbr.rel (%p18) target = $region8
    $region5: #{tpu_custom_call.1} parent=1 // loop_body
      %s22 = ssub.s32 %s17, 1
      %s23 = ssub.s32 %s17, 2
      %s30 = sadd.s32 1, %s25
      %p31 = scmp.ge.s32.totalorder %s30, 1
      %s32 = scalar_select %p31, 0, %s30
      %s33 = sadd.s32 1, %s24
      %s34 = scalar_select %p31, %s33, %s24
      %p35 = scmp.ge.s32.totalorder %s34, 2
      %s36 = scalar_select %p35, 0, %s34
      %s37 = ssub.s32 %s24, %s36
      %s38 = ssub.s32 %s25, %s32
      %s39 = sor.u32 %s37, %s38
      %p40 = scmp.eq.s32.totalorder %s39, 0
      %s42 = sadd.s32 %s41, 1
      %s43 = scalar_select %p40, %s41, %s42
      %p46 = pneg %p40
      %p47 = scmp.eq.s32.totalorder %s17, 1
      %p48 = por %p46, %p47
      %p49 = scmp.ne.s32.totalorder %s41, %s44
      %p50 = scmp.eq.s32.totalorder %s17, 0
      %p51 = por %p49, %p50
      %p52 = scmp.ne.s32.totalorder %s41, %s44
      %p53 = scmp.eq.s32.totalorder %s22, 1
      %p54 = por %p52, %p53
      %p55 = scmp.ne.s32.totalorder %s44, %s45
      %p56 = scmp.eq.s32.totalorder %s22, 0
      %p57 = por %p55, %p56
      %p58 = scmp.ne.s32.totalorder %s44, %s45
      %p59 = scmp.eq.s32.totalorder %s23, 1
      %p60 = por %p58, %p59
      %p62 = scmp.ne.s32.totalorder %s45, %s61
      %p63 = scmp.eq.s32.totalorder %s23, 0
      %p64 = por %p62, %p63
      %s66 = sadd.s32 %s65, 1
      %p69 = scmp.eq.s32.totalorder %s17, 1
      %p70 = scmp.ne.s32.totalorder %s65, %s67
      %p71 = scmp.eq.s32.totalorder %s17, 0
      %p72 = por %p70, %p71
      %p73 = scmp.ne.s32.totalorder %s65, %s67
      %p74 = scmp.eq.s32.totalorder %s22, 1
      %p75 = por %p73, %p74
      %p76 = scmp.ne.s32.totalorder %s67, %s68
      %p77 = scmp.eq.s32.totalorder %s22, 0
      %p78 = por %p76, %p77
      %p79 = scmp.ne.s32.totalorder %s67, %s68
      %p80 = scmp.eq.s32.totalorder %s23, 1
      %p81 = por %p79, %p80
      %p83 = scmp.ne.s32.totalorder %s68, %s82
      %p84 = scmp.eq.s32.totalorder %s23, 0
      %p85 = por %p83, %p84
      %s87 = sadd.s32 %s86, 1
      %p90 = scmp.eq.s32.totalorder %s17, 1
      %p91 = scmp.ne.s32.totalorder %s86, %s88
      %p92 = scmp.eq.s32.totalorder %s17, 0
      %p93 = por %p91, %p92
      %p94 = scmp.ne.s32.totalorder %s86, %s88
      %p95 = scmp.eq.s32.totalorder %s22, 1
      %p96 = por %p94, %p95
      %p97 = scmp.ne.s32.totalorder %s88, %s89
      %p98 = scmp.eq.s32.totalorder %s22, 0
      %p99 = por %p97, %p98
      %p100 = scmp.ne.s32.totalorder %s88, %s89
      %p101 = scmp.eq.s32.totalorder %s23, 1
      %p102 = por %p100, %p101
      %p104 = scmp.ne.s32.totalorder %s89, %s103
      %p105 = scmp.eq.s32.totalorder %s23, 0
      %p106 = por %p104, %p105
      %s108 = sadd.s32 %s107, 1
      %p111 = scmp.eq.s32.totalorder %s17, 1
      %p112 = scmp.ne.s32.totalorder %s107, %s109
      %p113 = scmp.eq.s32.totalorder %s17, 0
      %p114 = por %p112, %p113
      %p115 = scmp.ne.s32.totalorder %s107, %s109
      %p116 = scmp.eq.s32.totalorder %s22, 1
      %p117 = por %p115, %p116
      %p118 = scmp.ne.s32.totalorder %s109, %s110
      %p119 = scmp.eq.s32.totalorder %s22, 0
      %p120 = por %p118, %p119
      %p121 = scmp.ne.s32.totalorder %s109, %s110
      %p122 = scmp.eq.s32.totalorder %s23, 1
      %p123 = por %p121, %p122
      %p125 = scmp.ne.s32.totalorder %s110, %s124
      %p126 = scmp.eq.s32.totalorder %s23, 0
      %p127 = por %p125, %p126
      %s128 = ssub.s32 %s24, %s36
      %s129 = ssub.s32 %s25, %s32
      %s130 = sor.u32 %s128, %s129
      %p131 = scmp.eq.s32.totalorder %s130, 0
      %s133 = sadd.s32 %s132, 1
      %s134 = scalar_select %p131, %s132, %s133
      %p137 = pneg %p131
      %p138 = scmp.eq.s32.totalorder %s17, 1
      %p139 = por %p137, %p138
      %p140 = scmp.ne.s32.totalorder %s132, %s135
      %p141 = scmp.eq.s32.totalorder %s17, 0
      %p142 = por %p140, %p141
      %p143 = scmp.ne.s32.totalorder %s132, %s135
      %p144 = scmp.eq.s32.totalorder %s22, 1
      %p145 = por %p143, %p144
      %p146 = scmp.ne.s32.totalorder %s135, %s136
      %p147 = scmp.eq.s32.totalorder %s22, 0
      %p148 = por %p146, %p147
      %p149 = scmp.ne.s32.totalorder %s135, %s136
      %p150 = scmp.eq.s32.totalorder %s23, 1
      %p151 = por %p149, %p150
      %p153 = scmp.ne.s32.totalorder %s136, %s152
      %p154 = scmp.eq.s32.totalorder %s23, 0
      %p155 = por %p153, %p154
      %p156 = scmp.le.s32.totalorder 1, %s17
      %p157 = scmp.lt.s32.totalorder %s17, 3
      %p158 = pnand %p156, %p157
      %p159 = pneg %p158
      // Predicated region
      $region9: #{tpu_custom_call.1} parent=5 // pred_check
        _
      $region10: #{tpu_custom_call.1} parent=5 // pred_check_branch
        %161 = sbr.rel (%p158) target = $region12
      $region11: #{tpu_custom_call.1} parent=5 // pred_region
        %s162 = ssub.s32 %s17, 1
        // Predicated region
        $region13: #{tpu_custom_call.1} parent=11 // pred_check
          %p163 = pneg %p78
        $region14: #{tpu_custom_call.1} parent=11 // pred_check_branch
          %165 = sbr.rel (%p163) target = $region16
        $region15: #{tpu_custom_call.1} parent=11 // pred_region
          %167 = vsyncadd [#allocation7], 0
          %s168 = sshll.u32 %s1, 4
          %s169 = int_to_ptr.hbm [resolvable:$true] %s168
          %s170 = sshll.u32 [#allocation6], 4
          %s171 = int_to_ptr.vmem [resolvable:$true] %s170
          %176 = dma.hbm_to_vmem [thread:$0]  %s169, 512, %s171, [#allocation7], 128, 128, 8
        $region16: #{tpu_custom_call.1} parent=11 // pred_fallthru
          _
        // Predicated region
        $region17: #{tpu_custom_call.1} parent=11 // pred_check
          %p177 = pneg %p99
        $region18: #{tpu_custom_call.1} parent=11 // pred_check_branch
          %179 = sbr.rel (%p177) target = $region20
        $region19: #{tpu_custom_call.1} parent=11 // pred_region
          %181 = vsyncadd [#allocation7], 0
          %s182 = sshll.u32 %s2, 4
          %s183 = int_to_ptr.hbm [resolvable:$true] %s182
          %s184 = sshll.u32 [#allocation8], 4
          %s185 = int_to_ptr.vmem [resolvable:$true] %s184
          %190 = dma.hbm_to_vmem [thread:$0]  %s183, 512, %s185, [#allocation7], 128, 128, 8
        $region20: #{tpu_custom_call.1} parent=11 // pred_fallthru
          _
        // Predicated region
        $region21: #{tpu_custom_call.1} parent=11 // pred_check
          %p191 = pneg %p120
        $region22: #{tpu_custom_call.1} parent=11 // pred_check_branch
          %193 = sbr.rel (%p191) target = $region24
        $region23: #{tpu_custom_call.1} parent=11 // pred_region
          _
        $region24: #{tpu_custom_call.1} parent=11 // pred_fallthru
          _
      $region12: #{tpu_custom_call.1} parent=5 // pred_fallthru
        _
      %p194 = scmp.lt.s32.totalorder %s17, 2
      // Predicated region
      $region25: #{tpu_custom_call.1} parent=5 // pred_check
        %p195 = pneg %p194
      $region26: #{tpu_custom_call.1} parent=5 // pred_check_branch
        %197 = sbr.rel (%p195) target = $region28
      $region27: #{tpu_custom_call.1} parent=5 // pred_region
        // Predicated region
        $region29: #{tpu_custom_call.1} parent=27 // pred_check
          %p198 = pneg %p51
        $region30: #{tpu_custom_call.1} parent=27 // pred_check_branch
          %200 = sbr.rel (%p198) target = $region32
        $region31: #{tpu_custom_call.1} parent=27 // pred_region
          %s201 = sand.u32 %s41, 1
          %s202 = scalar_lea.sflag [#allocation4], %s201
          %s203 = sand.u32 %s41, 1
          %s204 = smul.addr %s203, 16
          %s205 = scalar_lea.vmem [#allocation3], %s204
          %s206 = smul.u32 2, %s25
          %208 = vsyncadd %s202, 0
          %s209 = smul.addr %s24, 2
          %s210 = sadd.s32 %s206, %s209
          %s211 = smul.addr %s210, 8
          %s212 = scalar_lea.hbm %s0, %s211
          %s213 = sshll.u32 %s212, 4
          %s214 = int_to_ptr.hbm [resolvable:$true] %s213
          %s215 = sshll.u32 %s205, 4
          %s216 = int_to_ptr.vmem [resolvable:$true] %s215
          %221 = dma.hbm_to_vmem [thread:$0]  %s214, 256, %s216, %s202, 128, 128, 8
        $region32: #{tpu_custom_call.1} parent=27 // pred_fallthru
          _
      $region28: #{tpu_custom_call.1} parent=5 // pred_fallthru
        _
      %p222 = scmp.le.s32.totalorder 1, %s17
      %p223 = scmp.lt.s32.totalorder %s17, 3
      %p224 = pnand %p222, %p223
      %p225 = pneg %p224
      // Predicated region
      $region33: #{tpu_custom_call.1} parent=5 // pred_check
        _
      $region34: #{tpu_custom_call.1} parent=5 // pred_check_branch
        %227 = sbr.rel (%p224) target = $region36
      $region35: #{tpu_custom_call.1} parent=5 // pred_region
        %s228 = ssub.s32 %s17, 1
        %s229 = sand.u32 %s44, 1
        %s230 = scalar_lea.sflag [#allocation4], %s229
        %s231 = sand.u32 %s44, 1
        %s232 = smul.addr %s231, 16
        %s233 = scalar_lea.vmem [#allocation3], %s232
        // Predicated region
        $region37: #{tpu_custom_call.1} parent=35 // pred_check
          %p234 = pneg %p57
        $region38: #{tpu_custom_call.1} parent=35 // pred_check_branch
          %236 = sbr.rel (%p234) target = $region40
        $region39: #{tpu_custom_call.1} parent=35 // pred_region
          %238 = dma.done %s230, 256
        $region40: #{tpu_custom_call.1} parent=35 // pred_fallthru
          _
        // Predicated region
        $region41: #{tpu_custom_call.1} parent=35 // pred_check
          %p239 = pneg %p78
        $region42: #{tpu_custom_call.1} parent=35 // pred_check_branch
          %241 = sbr.rel (%p239) target = $region44
        $region43: #{tpu_custom_call.1} parent=35 // pred_region
          %243 = dma.done [#allocation7], 512
        $region44: #{tpu_custom_call.1} parent=35 // pred_fallthru
          _
        // Predicated region
        $region45: #{tpu_custom_call.1} parent=35 // pred_check
          %p244 = pneg %p99
        $region46: #{tpu_custom_call.1} parent=35 // pred_check_branch
          %246 = sbr.rel (%p244) target = $region48
        $region47: #{tpu_custom_call.1} parent=35 // pred_region
          %248 = dma.done [#allocation7], 512
        $region48: #{tpu_custom_call.1} parent=35 // pred_fallthru
          _
        %s249 = sand.u32 %s44, 1
        %s250 = scalar_lea.sflag [#allocation4], %s249
        %s251 = sand.u32 %s44, 1
        %s252 = smul.addr %s251, 16
        %s253 = scalar_lea.vmem [#allocation3], %s252
        %p254 = pneg %p57
        %p255 = pneg %p54
        %p256 = pneg %p78
        %p257 = pneg %p75
        %p258 = pneg %p99
        %p259 = pneg %p96
        %p260 = pneg %p120
        %p261 = pneg %p117
        %p262 = pneg %p148
        %p263 = pneg %p145
        %s264 = sand.u32 %s135, 1
        %s265 = scalar_lea.sflag [#allocation5], %s264
        %s266 = sand.u32 %s135, 1
        %s267 = smul.addr %s266, 16
        %s268 = scalar_lea.vmem [#allocation9], %s267
        %s269 = smul.u32 2, %s27
        %s270 = smul.u32 2, %s27
        %p271 = scmp.eq.s32.totalorder %s27, 0
        // Predicated region
        $region49: #{tpu_custom_call.1} parent=35 // pred_check
          %p272 = pneg %p271
        $region50: #{tpu_custom_call.1} parent=35 // pred_check_branch
          %274 = sbr.rel (%p272) target = $region52
        $region51: #{tpu_custom_call.1} parent=35 // pred_region
          %vm275 = vcmask 261120
          %276 = vst.msk [vmem:[#allocation2] sm:$0xff] %vm275, 0.0
          %277 = vst.msk [vmem:[#allocation2 + $0x8] sm:$0xff] %vm275, 0.0
        $region52: #{tpu_custom_call.1} parent=35 // pred_fallthru
          _
        %v278 = vld [vmem:[%s233] sm:$0xff]
        %v279 = vld [vmem:[%s233 + $0x8] sm:$0xff]
        %v280 = vlaneseq
        %v281 = vshrl.u32 %v280, 7
        %v282 = vadd.s32 %v281, 8
        %vm283 = vcmp.ge.s32.totalorder %v281, 15
        %vm284 = vcmp.ge.s32.totalorder %v282, 15
        %v285 = vld [vmem:[#allocation2] sm:$0xff]
        %v286 = vld [vmem:[#allocation2 + $0x8] sm:$0xff]
        %v287 = vsel %vm283, %v285, %v278
        %v288 = vsel %vm284, %v286, %v279
        %v289 = vrot.slane %v287, 7
        %v290 = vrot.slane %v288, 7
        %vm291 = vcmp.lt.s32.totalorder %v281, 1
        %v292 = vsel %vm291, %v289, %v290
        %v293 = vsel %vm291, %v290, %v289
        %v294 = vld [vmem:[#allocation6] sm:$0xff]
        %v295 = vld [vmem:[#allocation6 + $0x8] sm:$0xff]
        %v296 = vld [vmem:[#allocation6 + $0x10] sm:$0xff]
        %v297 = vld [vmem:[#allocation6 + $0x18] sm:$0xff]
        %v298 = vld [vmem:[#allocation8] sm:$0xff]
        %v299 = vld [vmem:[#allocation8 + $0x8] sm:$0xff]
        %v300 = vld [vmem:[#allocation8 + $0x10] sm:$0xff]
        %v301 = vld [vmem:[#allocation8 + $0x18] sm:$0xff]
        %vm302 = vcmask 261120
        %v304 = vsel %vm302, %v278, 0
        %v307 = vsel %vm302, %v279, 0
        %309 = vmatpush.msra.mxu0 0.0
        %310 = vmatpush.msra.mxu0 0.0
        %311 = vmatpush.msra.mxu0 0.0
        %312 = vmatpush.msra.mxu0 0.0
        %313 = vmatpush.msra.mxu0 0.0
        %314 = vmatpush.msra.mxu0 0.0
        %315 = vmatpush.msra.mxu0 0.0
        %316 = vmatpush.msra.mxu0 0.0
        %317 = vmatpush.msra.mxu0 0.0
        %318 = vmatpush.msra.mxu0 0.0
        %319 = vmatpush.msra.mxu0 0.0
        %320 = vmatpush.msra.mxu0 0.0
        %321 = vmatpush.msra.mxu0 %v301
        %322 = vmatpush.msra.mxu0 %v300
        %323 = vmatpush.msra.mxu0 %v299
        %324 = vmatpush.msra.mxu0 %v298
        %325 = vmatmul.f32.gmra.mxu0 %v304
        %v326 = vpop.f32.mrf.mxu0
        %v327 = vadd.f32 0.0, %v326
        %328 = vmatmul.f32.gmra.mxu0 %v307
        %v329 = vpop.f32.mrf.mxu0
        %v330 = vadd.f32 0.0, %v329
        %331 = vdwg.mxu0
        %v333 = vsel %vm302, %v293, 0
        %v336 = vsel %vm302, %v292, 0
        %338 = vmatpush.msra.mxu0 0.0
        %339 = vmatpush.msra.mxu0 0.0
        %340 = vmatpush.msra.mxu0 0.0
        %341 = vmatpush.msra.mxu0 0.0
        %342 = vmatpush.msra.mxu0 0.0
        %343 = vmatpush.msra.mxu0 0.0
        %344 = vmatpush.msra.mxu0 0.0
        %345 = vmatpush.msra.mxu0 0.0
        %346 = vmatpush.msra.mxu0 0.0
        %347 = vmatpush.msra.mxu0 0.0
        %348 = vmatpush.msra.mxu0 0.0
        %349 = vmatpush.msra.mxu0 0.0
        %350 = vmatpush.msra.mxu0 %v297
        %351 = vmatpush.msra.mxu0 %v296
        %352 = vmatpush.msra.mxu0 %v295
        %353 = vmatpush.msra.mxu0 %v294
        %354 = vmatmul.f32.gmra.mxu0 %v333
        %v355 = vpop.f32.mrf.mxu0
        %v356 = vadd.f32 %v327, %v355
        %357 = vmatmul.f32.gmra.mxu0 %v336
        %v358 = vpop.f32.mrf.mxu0
        %v359 = vadd.f32 %v330, %v358
        %360 = vdwg.mxu0
        %v361 = vld [vmem:[%s3] sm:$0x1]
        %v363 = vperm.slane %v361, 0
        %v365 = vadd.f32 %v356, %v363
        %v366 = vadd.f32 %v359, %v363
        %v367 = vtanh.pop %v365
        %v368 = vtanh.pop %v366
        %369 = vst.msk [vmem:[%s268] sm:$0xff] %vm302, %v367
        %370 = vst.msk [vmem:[%s268 + $0x8] sm:$0xff] %vm302, %v368
        %371 = vst.msk [vmem:[#allocation2] sm:$0xff] %vm302, %v278
        %372 = vst.msk [vmem:[#allocation2 + $0x8] sm:$0xff] %vm302, %v279
        %s373 = sand.u32 %s135, 1
        %s374 = scalar_lea.sflag [#allocation5], %s373
        %s375 = sand.u32 %s135, 1
        %s376 = smul.addr %s375, 16
        %s377 = scalar_lea.vmem [#allocation9], %s376
        // Predicated region
        $region53: #{tpu_custom_call.1} parent=35 // pred_check
          %p378 = pneg %p145
        $region54: #{tpu_custom_call.1} parent=35 // pred_check_branch
          %380 = sbr.rel (%p378) target = $region56
        $region55: #{tpu_custom_call.1} parent=35 // pred_region
          %s381 = smul.u32 2, %s27
          %383 = vsyncadd %s374, 0
          %s384 = smul.addr %s26, 2
          %s385 = sadd.s32 %s381, %s384
          %s386 = smul.addr %s385, 8
          %s387 = scalar_lea.hbm %s4, %s386
          %s388 = sshll.u32 %s377, 4
          %s389 = int_to_ptr.vmem [resolvable:$true] %s388
          %s390 = sshll.u32 %s387, 4
          %s391 = int_to_ptr.hbm [resolvable:$true] %s390
          %396 = dma.vmem_to_hbm [thread:$0]  %s389, 256, %s391, %s374, 128, 128, 8
        $region56: #{tpu_custom_call.1} parent=35 // pred_fallthru
          _
      $region36: #{tpu_custom_call.1} parent=5 // pred_fallthru
        _
      %p397 = scmp.le.s32.totalorder 2, %s17
      // Predicated region
      $region57: #{tpu_custom_call.1} parent=5 // pred_check
        %p398 = pneg %p397
      $region58: #{tpu_custom_call.1} parent=5 // pred_check_branch
        %400 = sbr.rel (%p398) target = $region60
      $region59: #{tpu_custom_call.1} parent=5 // pred_region
        %s401 = ssub.s32 %s17, 2
        // Predicated region
        $region61: #{tpu_custom_call.1} parent=59 // pred_check
          %p402 = pneg %p151
        $region62: #{tpu_custom_call.1} parent=59 // pred_check_branch
          %404 = sbr.rel (%p402) target = $region64
        $region63: #{tpu_custom_call.1} parent=59 // pred_region
          %s405 = sand.u32 %s136, 1
          %s406 = scalar_lea.sflag [#allocation5], %s405
          %s407 = sand.u32 %s136, 1
          %s408 = smul.addr %s407, 16
          %s409 = scalar_lea.vmem [#allocation9], %s408
          %411 = dma.done %s406, 256
        $region64: #{tpu_custom_call.1} parent=59 // pred_fallthru
          _
      $region60: #{tpu_custom_call.1} parent=5 // pred_fallthru
        _
    $region6: #{tpu_custom_call.1} parent=1 // loop_footer
      %s21 = sadd.s32 1, %s17
    $region7: #{tpu_custom_call.1} parent=1 // loop_footer_branch
      %16 = sbr.rel target = $region3
    $region8: #{tpu_custom_call.1} parent=1 // loop_exit
      _
    %412 = vsyncpa [#allocation4], 1
    %s413 = scalar_lea.sflag [#allocation4], 1
    %414 = vsyncpa %s413, 1
    %415 = vsyncpa [#allocation7], 1
    %416 = vsyncpa [#allocation5], 1
    %s417 = scalar_lea.sflag [#allocation5], 1
    %418 = vsyncpa %s417, 1

</llo_original>
